<compile_context>
chip_gen: v5e
topology: v5e:2x2
jax: 0.10.0
libtpu: 0.0.40
codegen_flags: <defaults>
</compile_context>

<pallas_src>
import math

import jax
import jax.numpy as jnp
from jax.experimental import pallas as pl
from jax.experimental.pallas import tpu as pltpu

_LANE = 128
_HEAD_ROWS = 8  # padded head width (3 real rows), sublane-aligned


def _round_up(a, m):
    return ((a + m - 1) // m) * m


def _sine_predictor_kernel(x_ref, w1_ref, b1_ref, w2_ref, b2_ref,
                           w3t_ref, b3t_ref, o_ref):
    # x tile (TB, D) already bf16 (cast in the wrapper).
    x = x_ref[...]

    # Layer 1: Linear(D -> HP) + ReLU   (Dropout = identity in eval mode)
    h1 = jnp.dot(x, w1_ref[...], preferred_element_type=jnp.float32) + b1_ref[...]
    h1 = jnp.maximum(h1, 0.0)

    # Layer 2: Linear(HP -> H2P) + ReLU
    h2 = jnp.dot(h1.astype(jnp.bfloat16), w2_ref[...],
                 preferred_element_type=jnp.float32) + b2_ref[...]
    h2 = jnp.maximum(h2, 0.0)

    # Layer 3, transposed: rawT = w3^T @ h2^T  -> (8, TB), lane-dense over batch.
    # The f32 (TB, H2P) -> (H2P, TB) transpose uses the XLU (idle slot here).
    h2t = h2.T
    rawT = jnp.dot(w3t_ref[...], h2t.astype(jnp.bfloat16),
                   preferred_element_type=jnp.float32) + b3t_ref[...]

    # Head on the lane-dense (8, TB) slab (~16x fewer vregs through EUP/VPU
    # than the old (TB, 128) formulation):
    #   row 0: softplus(raw) + 1e-6   (amplitude)
    #   row 1: tanh(raw) * pi         (phase shift)
    #   row 2: raw                    (baseline); rows >=3 are zero padding.
    row = jax.lax.broadcasted_iota(jnp.int32, rawT.shape, 0)
    softplus = jnp.maximum(rawT, 0.0) + jnp.log1p(jnp.exp(-jnp.abs(rawT)))
    amplitude = softplus + 1e-6
    phase = jnp.tanh(rawT) * jnp.float32(math.pi)
    out = jnp.where(row == 0, amplitude, jnp.where(row == 1, phase, rawT))
    o_ref[...] = out.astype(o_ref.dtype)


def prepare_params(params):
    """Pad params to lane-dense shapes; weights bf16, biases f32 (zeros in pads).

    Layer-3 weight/bias are stored TRANSPOSED: w3t (8, H2P), b3t (8, 1).
    """
    w1, b1, w2, b2, w3, b3 = params
    D, H = w1.shape
    H2 = w2.shape[1]
    HP, H2P = _round_up(H, _LANE), _round_up(H2, _LANE)

    def pad_to(a, shape, dtype):
        out = jnp.zeros(shape, jnp.float32)
        out = out.at[: a.shape[0], : a.shape[1]].set(a)
        return out.astype(dtype)

    return (pad_to(w1, (D, HP), jnp.bfloat16),
            pad_to(b1, (1, HP), jnp.float32),
            pad_to(w2, (HP, H2P), jnp.bfloat16),
            pad_to(b2, (1, H2P), jnp.float32),
            pad_to(w3.T, (_HEAD_ROWS, H2P), jnp.bfloat16),
            pad_to(b3.T, (_HEAD_ROWS, 1), jnp.float32))


def _choose_batch_tiling(B, batch_tile):
    """TB multiple of 128; >=2 (even) grid steps for mid/large B; TB sized to B."""
    B128 = _round_up(max(B, 1), _LANE)
    n_tiles = max(1, pl.cdiv(B128, batch_tile))
    # v7x megacore: give both TensorCores work once tiles stay >= 256 rows.
    if n_tiles == 1 and B128 >= 512:
        n_tiles = 2
    if n_tiles > 1 and n_tiles % 2 == 1:
        n_tiles += 1
    TB = _round_up(pl.cdiv(B128, n_tiles), _LANE)
    B_pad = TB * n_tiles
    return TB, B_pad, n_tiles


def sine_parameter_predictor(x, padded_params, *, batch_tile=4096):
    """x: (B, input_dim) float32.  Returns (B, 3) float32."""
    w1, b1, w2, b2, w3t, b3t = padded_params
    B, D = x.shape
    HP = w1.shape[1]
    H2P = w2.shape[1]
    NR = w3t.shape[0]  # 8 padded head rows

    # Cap TB so the per-tile working set (x double-buffer + f32/bf16 activations
    # + transposed h2 + output double-buffer) stays ~<=12 MiB.
    bytes_per_row = 4 * D + 6 * HP + 8 * H2P + 8 * NR
    max_tb = max(_LANE, ((12 * 1024 * 1024) // max(bytes_per_row, 1)) // _LANE * _LANE)
    TB, B_pad, _ = _choose_batch_tiling(B, min(batch_tile, max_tb))

    xp = x
    if B_pad != B:
        xp = jnp.pad(xp, ((0, B_pad - B), (0, 0)))
    xp = xp.astype(jnp.bfloat16)   # halve x HBM read + VMEM double-buffer

    grid = (B_pad // TB,)

    def resident(shape):
        return pl.BlockSpec(shape, lambda i: (0,) * len(shape))

    flops = 2 * B_pad * (D * HP + HP * H2P + NR * H2P)
    transcendentals = 3 * NR * B_pad
    bytes_accessed = (B_pad * D * 2 + NR * B_pad * 4
                      + (D * HP + HP * H2P + NR * H2P) * 2
                      + (HP + H2P + NR) * 4)

    outT = pl.pallas_call(
        _sine_predictor_kernel,
        out_shape=jax.ShapeDtypeStruct((NR, B_pad), jnp.float32),
        grid=grid,
        in_specs=[
            pl.BlockSpec((TB, D), lambda i: (i, 0)),   # x: tiled over batch rows
            resident((D, HP)), resident((1, HP)),      # layer-1 weights resident
            resident((HP, H2P)), resident((1, H2P)),   # layer-2 weights resident
            resident((NR, H2P)), resident((NR, 1)),    # layer-3 (transposed) resident
        ],
        out_specs=pl.BlockSpec((NR, TB), lambda i: (0, i)),  # (8, TB) lane-dense
        compiler_params=pltpu.CompilerParams(
            dimension_semantics=("parallel",),
            vmem_limit_bytes=32 * 1024 * 1024,
        ),
        cost_estimate=pl.CostEstimate(
            flops=int(flops),
            transcendentals=int(transcendentals),
            bytes_accessed=int(bytes_accessed),
        ),
    )(xp, w1, b1, w2, b2, w3t, b3t)

    # Rows: 0 amplitude, 1 phase, 2 baseline; padded rows/cols sliced off.
    return outT[:3, :B].T


def init_params(key, input_dim, hidden_dim):
    """Deterministic init matching nn.Linear shapes (stored transposed, f32)."""
    h2 = hidden_dim // 2
    ks = jax.random.split(key, 6)

    def lin(kw, kb, fan_in, fan_out):
        bound = 1.0 / math.sqrt(fan_in)
        w = jax.random.uniform(kw, (fan_in, fan_out), jnp.float32, -bound, bound)
        b = jax.random.uniform(kb, (1, fan_out), jnp.float32, -bound, bound)
        return w, b

    w1, b1 = lin(ks[0], ks[1], input_dim, hidden_dim)
    w2, b2 = lin(ks[2], ks[3], hidden_dim, h2)
    w3, b3 = lin(ks[4], ks[5], h2, 3)
    return (w1, b1, w2, b2, w3, b3)


def reference_forward_f32(x, params):
    """Pure-JAX f32 reference of the PyTorch module (eval mode)."""
    w1, b1, w2, b2, w3, b3 = params
    h1 = jnp.maximum(x @ w1 + b1, 0.0)
    h2 = jnp.maximum(h1 @ w2 + b2, 0.0)
    raw = h2 @ w3 + b3
    amplitude = jax.nn.softplus(raw[:, 0:1]) + 1e-6
    phase = jnp.tanh(raw[:, 1:2]) * math.pi
    baseline = raw[:, 2:3]
    return jnp.concatenate([amplitude, phase, baseline], axis=1)


def reference_forward_bf16(x, params):
    """Reference matching the kernel's bf16-input / f32-accumulate matmuls."""
    w1, b1, w2, b2, w3, b3 = params
    bf = jnp.bfloat16
    h1 = jnp.maximum(
        jnp.dot(x.astype(bf), w1.astype(bf), preferred_element_type=jnp.float32) + b1, 0.0)
    h2 = jnp.maximum(
        jnp.dot(h1.astype(bf), w2.astype(bf), preferred_element_type=jnp.float32) + b2, 0.0)
    raw = jnp.dot(h2.astype(bf), w3.astype(bf), preferred_element_type=jnp.float32) + b3
    amplitude = jax.nn.softplus(raw[:, 0:1]) + 1e-6
    phase = jnp.tanh(raw[:, 1:2]) * math.pi
    baseline = raw[:, 2:3]
    return jnp.concatenate([amplitude, phase, baseline], axis=1)


if __name__ == "__main__":
    key = jax.random.PRNGKey(0)
    k_x, k_p = jax.random.split(key)

    B, INPUT_DIM, HIDDEN_DIM = 8, 16, 32
    x = jax.random.normal(k_x, (B, INPUT_DIM), jnp.float32)
    params = init_params(k_p, INPUT_DIM, HIDDEN_DIM)
    padded = prepare_params(params)

    out = sine_parameter_predictor(x, padded)
    out = jax.block_until_ready(out)

    ref_bf16 = reference_forward_bf16(x, params)
    ref_f32 = reference_forward_f32(x, params)

    assert out.shape == (B, 3), out.shape
    # Tight check against a reference using the same bf16-in / f32-acc matmuls.
    assert jnp.allclose(out, ref_bf16, atol=2e-3, rtol=2e-3), (out, ref_bf16)
    # Loose check against the full-f32 PyTorch-equivalent forward (bf16 rounding only).
    assert jnp.allclose(out, ref_f32, atol=5e-2, rtol=5e-2), (out, ref_f32)

    print("KERNEL_OK")
</pallas_src>

<mosaic_0001>
module attributes {stable_mosaic.version = 11 : i64} {
  func.func @_sine_predictor_kernel(%arg0: i32, %arg1: memref<128x16xbf16, #tpu.memory_space<vmem>>, %arg2: memref<16x128xbf16, #tpu.memory_space<vmem>>, %arg3: memref<1x128xf32, #tpu.memory_space<vmem>>, %arg4: memref<128x128xbf16, #tpu.memory_space<vmem>>, %arg5: memref<1x128xf32, #tpu.memory_space<vmem>>, %arg6: memref<8x128xbf16, #tpu.memory_space<vmem>>, %arg7: memref<8x1xf32, #tpu.memory_space<vmem>>, %arg8: memref<8x128xf32, #tpu.memory_space<vmem>>) attributes {dimension_semantics = [#tpu.dimension_semantics<parallel>], iteration_bounds = array<i64: 1>, scalar_prefetch = 0 : i64, scratch_operands = 0 : i64, tpu.core_type = #tpu.core_type<tc>, window_params = [{transform_indices = @transform_0, window_bounds = array<i64: 128, 16>}, {pipeline_mode = #tpu.pipeline_mode<synchronous>, transform_indices = @transform_1, window_bounds = array<i64: 16, 128>}, {pipeline_mode = #tpu.pipeline_mode<synchronous>, transform_indices = @transform_2, window_bounds = array<i64: 1, 128>}, {pipeline_mode = #tpu.pipeline_mode<synchronous>, transform_indices = @transform_3, window_bounds = array<i64: 128, 128>}, {pipeline_mode = #tpu.pipeline_mode<synchronous>, transform_indices = @transform_4, window_bounds = array<i64: 1, 128>}, {pipeline_mode = #tpu.pipeline_mode<synchronous>, transform_indices = @transform_5, window_bounds = array<i64: 8, 128>}, {pipeline_mode = #tpu.pipeline_mode<synchronous>, transform_indices = @transform_6, window_bounds = array<i64: 8, 1>}, {transform_indices = @transform_7, window_bounds = array<i64: 8, 128>}]} {
    %c0 = arith.constant 0 : index
    %c0_0 = arith.constant 0 : index
    %0 = vector.load %arg1[%c0, %c0_0] : memref<128x16xbf16, #tpu.memory_space<vmem>>, vector<128x16xbf16>
    %c0_1 = arith.constant 0 : index
    %c0_2 = arith.constant 0 : index
    %1 = vector.load %arg2[%c0_1, %c0_2] : memref<16x128xbf16, #tpu.memory_space<vmem>>, vector<16x128xbf16>
    %cst = arith.constant dense<0.000000e+00> : vector<128x128xf32>
    %2 = tpu.matmul %0, %1, %cst {dimension_numbers = #tpu.dot_dimension_numbers<[1], [0], [0], [1], [0, 0, 1, 1], [], []>} : vector<128x16xbf16>, vector<16x128xbf16>, vector<128x128xf32> -> vector<128x128xf32>
    %c0_3 = arith.constant 0 : index
    %c0_4 = arith.constant 0 : index
    %3 = vector.load %arg3[%c0_3, %c0_4] : memref<1x128xf32, #tpu.memory_space<vmem>>, vector<1x128xf32>
    %4 = vector.broadcast %3 : vector<1x128xf32> to vector<128x128xf32>
    %5 = arith.addf %2, %4 : vector<128x128xf32>
    %cst_5 = arith.constant 0.000000e+00 : f32
    %6 = vector.broadcast %cst_5 : f32 to vector<128x128xf32>
    %7 = arith.maximumf %5, %6 : vector<128x128xf32>
    %8 = arith.truncf %7 : vector<128x128xf32> to vector<128x128xbf16>
    %c0_6 = arith.constant 0 : index
    %c0_7 = arith.constant 0 : index
    %9 = vector.load %arg4[%c0_6, %c0_7] : memref<128x128xbf16, #tpu.memory_space<vmem>>, vector<128x128xbf16>
    %cst_8 = arith.constant dense<0.000000e+00> : vector<128x128xf32>
    %10 = tpu.matmul %8, %9, %cst_8 {dimension_numbers = #tpu.dot_dimension_numbers<[1], [0], [0], [1], [0, 0, 1, 1], [], []>} : vector<128x128xbf16>, vector<128x128xbf16>, vector<128x128xf32> -> vector<128x128xf32>
    %c0_9 = arith.constant 0 : index
    %c0_10 = arith.constant 0 : index
    %11 = vector.load %arg5[%c0_9, %c0_10] : memref<1x128xf32, #tpu.memory_space<vmem>>, vector<1x128xf32>
    %12 = vector.broadcast %11 : vector<1x128xf32> to vector<128x128xf32>
    %13 = arith.addf %10, %12 : vector<128x128xf32>
    %cst_11 = arith.constant 0.000000e+00 : f32
    %14 = vector.broadcast %cst_11 : f32 to vector<128x128xf32>
    %15 = arith.maximumf %13, %14 : vector<128x128xf32>
    %16 = tpu.transpose %15, [1, 0] : vector<128x128xf32> -> vector<128x128xf32>
    %c0_12 = arith.constant 0 : index
    %c0_13 = arith.constant 0 : index
    %17 = vector.load %arg6[%c0_12, %c0_13] : memref<8x128xbf16, #tpu.memory_space<vmem>>, vector<8x128xbf16>
    %18 = arith.truncf %16 : vector<128x128xf32> to vector<128x128xbf16>
    %cst_14 = arith.constant dense<0.000000e+00> : vector<8x128xf32>
    %19 = tpu.matmul %17, %18, %cst_14 {dimension_numbers = #tpu.dot_dimension_numbers<[1], [0], [0], [1], [0, 0, 1, 1], [], []>} : vector<8x128xbf16>, vector<128x128xbf16>, vector<8x128xf32> -> vector<8x128xf32>
    %c0_15 = arith.constant 0 : index
    %c0_16 = arith.constant 0 : index
    %20 = vector.load %arg7[%c0_15, %c0_16] : memref<8x1xf32, #tpu.memory_space<vmem>>, vector<8x1xf32>
    %21 = vector.broadcast %20 : vector<8x1xf32> to vector<8x128xf32>
    %22 = arith.addf %19, %21 : vector<8x128xf32>
    %23 = tpu.iota {dimensions = array<i32: 0>} : vector<8x128xi32>
    %cst_17 = arith.constant 0.000000e+00 : f32
    %24 = vector.broadcast %cst_17 : f32 to vector<8x128xf32>
    %25 = arith.maximumf %22, %24 : vector<8x128xf32>
    %26 = math.absf %22 : vector<8x128xf32>
    %cst_18 = arith.constant 0.000000e+00 : f32
    %27 = vector.broadcast %cst_18 : f32 to vector<8x128xf32>
    %28 = arith.subf %27, %26 : vector<8x128xf32>
    %29 = math.exp %28 : vector<8x128xf32>
    %30 = math.log1p %29 : vector<8x128xf32>
    %31 = arith.addf %25, %30 : vector<8x128xf32>
    %cst_19 = arith.constant 9.99999997E-7 : f32
    %32 = vector.broadcast %cst_19 : f32 to vector<8x128xf32>
    %33 = arith.addf %31, %32 : vector<8x128xf32>
    %34 = math.tanh %22 : vector<8x128xf32>
    %cst_20 = arith.constant 3.14159274 : f32
    %35 = vector.broadcast %cst_20 : f32 to vector<8x128xf32>
    %36 = arith.mulf %34, %35 : vector<8x128xf32>
    %c0_i32 = arith.constant 0 : i32
    %37 = vector.broadcast %c0_i32 : i32 to vector<8x128xi32>
    %38 = arith.cmpi eq, %23, %37 : vector<8x128xi32>
    %c1_i32 = arith.constant 1 : i32
    %39 = vector.broadcast %c1_i32 : i32 to vector<8x128xi32>
    %40 = arith.cmpi eq, %23, %39 : vector<8x128xi32>
    %41 = arith.select %40, %36, %22 : vector<8x128xi1>, vector<8x128xf32>
    %42 = arith.select %38, %33, %41 : vector<8x128xi1>, vector<8x128xf32>
    %c0_21 = arith.constant 0 : index
    %c0_22 = arith.constant 0 : index
    %43 = vector.load %arg8[%c0_21, %c0_22] : memref<8x128xf32, #tpu.memory_space<vmem>>, vector<8x128xf32>
    tpu.vector_store %arg8[%c0_21, %c0_22], %42 {strides = array<i32>} : memref<8x128xf32, #tpu.memory_space<vmem>>, vector<8x128xf32>,
    return
  }
  func.func @transform_0(%arg0: i32) -> (i32, i32) {
    %c0_i32 = arith.constant 0 : i32
    %c0_i32_0 = arith.constant 0 : i32
    return %arg0, %c0_i32 : i32, i32
  }
  func.func @transform_1(%arg0: i32) -> (i32, i32) {
    %c0_i32 = arith.constant 0 : i32
    %c0_i32_0 = arith.constant 0 : i32
    %c0_i32_1 = arith.constant 0 : i32
    return %c0_i32, %c0_i32_0 : i32, i32
  }
  func.func @transform_2(%arg0: i32) -> (i32, i32) {
    %c0_i32 = arith.constant 0 : i32
    %c0_i32_0 = arith.constant 0 : i32
    %c0_i32_1 = arith.constant 0 : i32
    return %c0_i32, %c0_i32_0 : i32, i32
  }
  func.func @transform_3(%arg0: i32) -> (i32, i32) {
    %c0_i32 = arith.constant 0 : i32
    %c0_i32_0 = arith.constant 0 : i32
    %c0_i32_1 = arith.constant 0 : i32
    return %c0_i32, %c0_i32_0 : i32, i32
  }
  func.func @transform_4(%arg0: i32) -> (i32, i32) {
    %c0_i32 = arith.constant 0 : i32
    %c0_i32_0 = arith.constant 0 : i32
    %c0_i32_1 = arith.constant 0 : i32
    return %c0_i32, %c0_i32_0 : i32, i32
  }
  func.func @transform_5(%arg0: i32) -> (i32, i32) {
    %c0_i32 = arith.constant 0 : i32
    %c0_i32_0 = arith.constant 0 : i32
    %c0_i32_1 = arith.constant 0 : i32
    return %c0_i32, %c0_i32_0 : i32, i32
  }
  func.func @transform_6(%arg0: i32) -> (i32, i32) {
    %c0_i32 = arith.constant 0 : i32
    %c0_i32_0 = arith.constant 0 : i32
    %c0_i32_1 = arith.constant 0 : i32
    return %c0_i32, %c0_i32_0 : i32, i32
  }
  func.func @transform_7(%arg0: i32) -> (i32, i32) {
    %c0_i32 = arith.constant 0 : i32
    %c0_i32_0 = arith.constant 0 : i32
    return %c0_i32, %arg0 : i32, i32
  }
}

</mosaic_0001>

<llo_original>
// kernel: tpu_custom_call.1
$region0: #{tpu_custom_call.1}
  #allocation0 [shape = 'u32[]', space=smem, size = 0x4, offset = 0x4, fixed_abs, tag = 'smem constant byte address 0x4 - core index']
  #allocation1 [shape = 'u32[72,128]{1,0:T(1,128)}', space=vmem, size = 0x9000, scoped, tag = 'internal scratch']
  %s0 = inlined_call_operand.vmem [shape: bf16[128,16], index: 0, kind: input, shape index: {}]
  %s1 = inlined_call_operand.vmem [shape: bf16[16,128], index: 1, kind: input, shape index: {}]
  %s2 = inlined_call_operand.vmem [shape: f32[1,128], index: 2, kind: input, shape index: {}]
  %s3 = inlined_call_operand.vmem [shape: bf16[128,128], index: 3, kind: input, shape index: {}]
  %s4 = inlined_call_operand.vmem [shape: f32[1,128], index: 4, kind: input, shape index: {}]
  %s5 = inlined_call_operand.vmem [shape: bf16[8,128], index: 5, kind: input, shape index: {}]
  %s6 = inlined_call_operand.vmem [shape: f32[8,1], index: 6, kind: input, shape index: {}]
  %s7 = inlined_call_operand.hbm [shape: f32[8,128], index: 7, kind: output, shape index: {}]
  %s8 = sld [smem:[#allocation0]]
  $region38: #{tpu_custom_call.1} parent=0
    _
  %s10 = ssub.s32 1, %s8
  %s11 = scalar_select 0, %s10, %s8
  $region1: #{tpu_custom_call.1} parent=0
    #allocation2 [shape = 'u8[4096]{0}', space=vmem, size = 0x1000, scoped, tag = 'output window, operand 0, single buffered']
    #allocation3 [shape = 's32[1]{0}', space=sflag, size = 0x4, scoped, tag = 'scoped memory for tpu_custom_call.1']
    %12 = vsyncpa [#allocation3], 0
    // Predicated region
    $region2: #{tpu_custom_call.1} parent=1 // pred_check
      _
    $region3: #{tpu_custom_call.1} parent=1 // pred_check_branch
      %14 = sbr.rel (0) target = $region5
    $region4: #{tpu_custom_call.1} parent=1 // pred_region
      _
    $region5: #{tpu_custom_call.1} parent=1 // pred_fallthru
      _
    // Predicated region
    $region6: #{tpu_custom_call.1} parent=1 // pred_check
      _
    $region7: #{tpu_custom_call.1} parent=1 // pred_check_branch
      %16 = sbr.rel (0) target = $region9
    $region8: #{tpu_custom_call.1} parent=1 // pred_region
      _
    $region9: #{tpu_custom_call.1} parent=1 // pred_fallthru
      _
    // Predicated region
    $region10: #{tpu_custom_call.1} parent=1 // pred_check
      _
    $region11: #{tpu_custom_call.1} parent=1 // pred_check_branch
      %18 = sbr.rel (0) target = $region13
    $region12: #{tpu_custom_call.1} parent=1 // pred_region
      _
    $region13: #{tpu_custom_call.1} parent=1 // pred_fallthru
      _
    // Predicated region
    $region14: #{tpu_custom_call.1} parent=1 // pred_check
      _
    $region15: #{tpu_custom_call.1} parent=1 // pred_check_branch
      %20 = sbr.rel (0) target = $region17
    $region16: #{tpu_custom_call.1} parent=1 // pred_region
      _
    $region17: #{tpu_custom_call.1} parent=1 // pred_fallthru
      _
    // Predicated region
    $region18: #{tpu_custom_call.1} parent=1 // pred_check
      _
    $region19: #{tpu_custom_call.1} parent=1 // pred_check_branch
      %22 = sbr.rel (0) target = $region21
    $region20: #{tpu_custom_call.1} parent=1 // pred_region
      _
    $region21: #{tpu_custom_call.1} parent=1 // pred_fallthru
      _
    // Predicated region
    $region22: #{tpu_custom_call.1} parent=1 // pred_check
      _
    $region23: #{tpu_custom_call.1} parent=1 // pred_check_branch
      %24 = sbr.rel (0) target = $region25
    $region24: #{tpu_custom_call.1} parent=1 // pred_region
      _
    $region25: #{tpu_custom_call.1} parent=1 // pred_fallthru
      _
    // Predicated region
    $region26: #{tpu_custom_call.1} parent=1 // pred_check
      _
    $region27: #{tpu_custom_call.1} parent=1 // pred_check_branch
      %26 = sbr.rel (0) target = $region29
    $region28: #{tpu_custom_call.1} parent=1 // pred_region
      _
    $region29: #{tpu_custom_call.1} parent=1 // pred_fallthru
      _
    %v28 = vld [vmem:[%s0] sm:$0xf]
    %v29 = vld [vmem:[%s0 + $0x4] sm:$0xf]
    %v30 = vld [vmem:[%s0 + $0x8] sm:$0xf]
    %v31 = vld [vmem:[%s0 + $0xc] sm:$0xf]
    %v32 = vld [vmem:[%s0 + $0x10] sm:$0xf]
    %v33 = vld [vmem:[%s0 + $0x14] sm:$0xf]
    %v34 = vld [vmem:[%s0 + $0x18] sm:$0xf]
    %v35 = vld [vmem:[%s0 + $0x1c] sm:$0xf]
    %v36 = vld [vmem:[%s0 + $0x20] sm:$0xf]
    %v37 = vld [vmem:[%s0 + $0x24] sm:$0xf]
    %v38 = vld [vmem:[%s0 + $0x28] sm:$0xf]
    %v39 = vld [vmem:[%s0 + $0x2c] sm:$0xf]
    %v40 = vld [vmem:[%s0 + $0x30] sm:$0xf]
    %v41 = vld [vmem:[%s0 + $0x34] sm:$0xf]
    %v42 = vld [vmem:[%s0 + $0x38] sm:$0xf]
    %v43 = vld [vmem:[%s0 + $0x3c] sm:$0xf]
    %v44 = vld [vmem:[%s1] sm:$0xf]
    %v45 = vld [vmem:[%s1 + $0x4] sm:$0xf]
    %v46 = vld [vmem:[%s2] sm:$0x1]
    %v48 = vperm.slane %v46, 0
    %v66 = vunpack.c.l.b16 %v28
    %v67 = vunpack.c.l.b16 %v29
    %v68 = vunpack.c.l.b16 %v30
    %v69 = vunpack.c.l.b16 %v31
    %v70 = vunpack.c.l.b16 %v32
    %v71 = vunpack.c.l.b16 %v33
    %v72 = vunpack.c.l.b16 %v34
    %v73 = vunpack.c.l.b16 %v35
    %v74 = vunpack.c.l.b16 %v36
    %v75 = vunpack.c.l.b16 %v37
    %v76 = vunpack.c.l.b16 %v38
    %v77 = vunpack.c.l.b16 %v39
    %v78 = vunpack.c.l.b16 %v40
    %v79 = vunpack.c.l.b16 %v41
    %v80 = vunpack.c.l.b16 %v42
    %v81 = vunpack.c.l.b16 %v43
    %v82 = vpack.c.b16 %v67, %v66
    %v83 = vpack.c.b16 %v69, %v68
    %v84 = vpack.c.b16 %v71, %v70
    %v85 = vpack.c.b16 %v73, %v72
    %v86 = vpack.c.b16 %v75, %v74
    %v87 = vpack.c.b16 %v77, %v76
    %v88 = vpack.c.b16 %v79, %v78
    %v89 = vpack.c.b16 %v81, %v80
    %v92 = vunpack.c.l.b16 %v44
    %v93 = vunpack.c.l.b16 %v45
    %v94 = vpack.c.b16 %v93, %v92
    %vm96 = vcmask 130048
    %v98 = vsel %vm96, %v82, 0
    %v101 = vsel %vm96, %v83, 0
    %v104 = vsel %vm96, %v84, 0
    %v107 = vsel %vm96, %v85, 0
    %v110 = vsel %vm96, %v86, 0
    %v113 = vsel %vm96, %v87, 0
    %v116 = vsel %vm96, %v88, 0
    %v119 = vsel %vm96, %v89, 0
    %121 = vmatpush.bf16.msra.mxu0 0
    %122 = vmatpush.bf16.msra.mxu0 0
    %123 = vmatpush.bf16.msra.mxu0 0
    %124 = vmatpush.bf16.msra.mxu0 0
    %125 = vmatpush.bf16.msra.mxu0 0
    %126 = vmatpush.bf16.msra.mxu0 0
    %127 = vmatpush.bf16.msra.mxu0 0
    %128 = vmatpush.bf16.msra.mxu0 %v94
    %129 = vmatmul.bf16.gmra.mxu0 %v98
    %v130 = vpop.f32.mrf.mxu0
    %v131 = vadd.f32 %v48, %v130
    %v132 = vpop.f32.mrf.mxu0
    %v133 = vadd.f32 %v48, %v132
    %134 = vmatmul.bf16.gmra.mxu0 %v101
    %v135 = vpop.f32.mrf.mxu0
    %v136 = vadd.f32 %v48, %v135
    %v137 = vpop.f32.mrf.mxu0
    %v138 = vadd.f32 %v48, %v137
    %139 = vmatmul.bf16.gmra.mxu0 %v104
    %v140 = vpop.f32.mrf.mxu0
    %v141 = vadd.f32 %v48, %v140
    %v142 = vpop.f32.mrf.mxu0
    %v143 = vadd.f32 %v48, %v142
    %144 = vmatmul.bf16.gmra.mxu0 %v107
    %v145 = vpop.f32.mrf.mxu0
    %v146 = vadd.f32 %v48, %v145
    %v147 = vpop.f32.mrf.mxu0
    %v148 = vadd.f32 %v48, %v147
    %149 = vmatmul.bf16.gmra.mxu0 %v110
    %v150 = vpop.f32.mrf.mxu0
    %v151 = vadd.f32 %v48, %v150
    %v152 = vpop.f32.mrf.mxu0
    %v153 = vadd.f32 %v48, %v152
    %154 = vmatmul.bf16.gmra.mxu0 %v113
    %v155 = vpop.f32.mrf.mxu0
    %v156 = vadd.f32 %v48, %v155
    %v157 = vpop.f32.mrf.mxu0
    %v158 = vadd.f32 %v48, %v157
    %159 = vmatmul.bf16.gmra.mxu0 %v116
    %v160 = vpop.f32.mrf.mxu0
    %v161 = vadd.f32 %v48, %v160
    %v162 = vpop.f32.mrf.mxu0
    %v163 = vadd.f32 %v48, %v162
    %164 = vmatmul.bf16.gmra.mxu0 %v119
    %v165 = vpop.f32.mrf.mxu0
    %v166 = vadd.f32 %v48, %v165
    %v167 = vpop.f32.mrf.mxu0
    %v168 = vadd.f32 %v48, %v167
    %169 = vdwg.mxu0
    %v170 = vmax.f32 %v131, 0.0
    %v171 = vmax.f32 %v133, 0.0
    %v172 = vmax.f32 %v136, 0.0
    %v173 = vmax.f32 %v138, 0.0
    %v174 = vmax.f32 %v141, 0.0
    %v175 = vmax.f32 %v143, 0.0
    %v176 = vmax.f32 %v146, 0.0
    %v177 = vmax.f32 %v148, 0.0
    %v178 = vmax.f32 %v151, 0.0
    %v179 = vmax.f32 %v153, 0.0
    %v180 = vmax.f32 %v156, 0.0
    %v181 = vmax.f32 %v158, 0.0
    %v182 = vmax.f32 %v161, 0.0
    %v183 = vmax.f32 %v163, 0.0
    %v184 = vmax.f32 %v166, 0.0
    %v185 = vmax.f32 %v168, 0.0
    %v186 = vpack.c.bf16 %v171, %v170
    %v187 = vpack.c.bf16 %v173, %v172
    %v188 = vpack.c.bf16 %v175, %v174
    %v189 = vpack.c.bf16 %v177, %v176
    %v190 = vpack.c.bf16 %v179, %v178
    %v191 = vpack.c.bf16 %v181, %v180
    %v192 = vpack.c.bf16 %v183, %v182
    %v193 = vpack.c.bf16 %v185, %v184
    %v194 = vld [vmem:[%s3] sm:$0xf]
    %v195 = vld [vmem:[%s3 + $0x4] sm:$0xf]
    %v196 = vld [vmem:[%s3 + $0x8] sm:$0xf]
    %v197 = vld [vmem:[%s3 + $0xc] sm:$0xf]
    %v198 = vld [vmem:[%s3 + $0x10] sm:$0xf]
    %v199 = vld [vmem:[%s3 + $0x14] sm:$0xf]
    %v200 = vld [vmem:[%s3 + $0x18] sm:$0xf]
    %v201 = vld [vmem:[%s3 + $0x1c] sm:$0xf]
    %v202 = vld [vmem:[%s3 + $0x20] sm:$0xf]
    %v203 = vld [vmem:[%s3 + $0x24] sm:$0xf]
    %v204 = vld [vmem:[%s3 + $0x28] sm:$0xf]
    %v205 = vld [vmem:[%s3 + $0x2c] sm:$0xf]
    %v206 = vld [vmem:[%s3 + $0x30] sm:$0xf]
    %v207 = vld [vmem:[%s3 + $0x34] sm:$0xf]
    %v208 = vld [vmem:[%s3 + $0x38] sm:$0xf]
    %v209 = vld [vmem:[%s3 + $0x3c] sm:$0xf]
    %v210 = vld [vmem:[%s4] sm:$0x1]
    %v212 = vperm.slane %v210, 0
    %v230 = vunpack.c.l.b16 %v194
    %v231 = vunpack.c.l.b16 %v195
    %v232 = vunpack.c.l.b16 %v196
    %v233 = vunpack.c.l.b16 %v197
    %v234 = vunpack.c.l.b16 %v198
    %v235 = vunpack.c.l.b16 %v199
    %v236 = vunpack.c.l.b16 %v200
    %v237 = vunpack.c.l.b16 %v201
    %v238 = vunpack.c.l.b16 %v202
    %v239 = vunpack.c.l.b16 %v203
    %v240 = vunpack.c.l.b16 %v204
    %v241 = vunpack.c.l.b16 %v205
    %v242 = vunpack.c.l.b16 %v206
    %v243 = vunpack.c.l.b16 %v207
    %v244 = vunpack.c.l.b16 %v208
    %v245 = vunpack.c.l.b16 %v209
    %v246 = vpack.c.b16 %v231, %v230
    %v247 = vpack.c.b16 %v233, %v232
    %v248 = vpack.c.b16 %v235, %v234
    %v249 = vpack.c.b16 %v237, %v236
    %v250 = vpack.c.b16 %v239, %v238
    %v251 = vpack.c.b16 %v241, %v240
    %v252 = vpack.c.b16 %v243, %v242
    %v253 = vpack.c.b16 %v245, %v244
    %262 = vmatpush.bf16.msra.mxu0 %v253
    %263 = vmatpush.bf16.msra.mxu0 %v252
    %264 = vmatpush.bf16.msra.mxu0 %v251
    %265 = vmatpush.bf16.msra.mxu0 %v250
    %266 = vmatpush.bf16.msra.mxu0 %v249
    %267 = vmatpush.bf16.msra.mxu0 %v248
    %268 = vmatpush.bf16.msra.mxu0 %v247
    %269 = vmatpush.bf16.msra.mxu0 %v246
    %270 = vmatmul.bf16.gmra.mxu0 %v186
    %v271 = vpop.f32.mrf.mxu0
    %v272 = vadd.f32 %v212, %v271
    %v273 = vpop.f32.mrf.mxu0
    %v274 = vadd.f32 %v212, %v273
    %275 = vmatmul.bf16.gmra.mxu0 %v187
    %v276 = vpop.f32.mrf.mxu0
    %v277 = vadd.f32 %v212, %v276
    %v278 = vpop.f32.mrf.mxu0
    %v279 = vadd.f32 %v212, %v278
    %280 = vmatmul.bf16.gmra.mxu0 %v188
    %v281 = vpop.f32.mrf.mxu0
    %v282 = vadd.f32 %v212, %v281
    %v283 = vpop.f32.mrf.mxu0
    %v284 = vadd.f32 %v212, %v283
    %285 = vmatmul.bf16.gmra.mxu0 %v189
    %v286 = vpop.f32.mrf.mxu0
    %v287 = vadd.f32 %v212, %v286
    %v288 = vpop.f32.mrf.mxu0
    %v289 = vadd.f32 %v212, %v288
    %290 = vmatmul.bf16.gmra.mxu0 %v190
    %v291 = vpop.f32.mrf.mxu0
    %v292 = vadd.f32 %v212, %v291
    %v293 = vpop.f32.mrf.mxu0
    %v294 = vadd.f32 %v212, %v293
    %295 = vmatmul.bf16.gmra.mxu0 %v191
    %v296 = vpop.f32.mrf.mxu0
    %v297 = vadd.f32 %v212, %v296
    %v298 = vpop.f32.mrf.mxu0
    %v299 = vadd.f32 %v212, %v298
    %300 = vmatmul.bf16.gmra.mxu0 %v192
    %v301 = vpop.f32.mrf.mxu0
    %v302 = vadd.f32 %v212, %v301
    %v303 = vpop.f32.mrf.mxu0
    %v304 = vadd.f32 %v212, %v303
    %305 = vmatmul.bf16.gmra.mxu0 %v193
    %v306 = vpop.f32.mrf.mxu0
    %v307 = vadd.f32 %v212, %v306
    %v308 = vpop.f32.mrf.mxu0
    %v309 = vadd.f32 %v212, %v308
    %310 = vdwg.mxu0
    %v311 = vmax.f32 %v272, 0.0
    %v312 = vmax.f32 %v274, 0.0
    %v313 = vmax.f32 %v277, 0.0
    %v314 = vmax.f32 %v279, 0.0
    %v315 = vmax.f32 %v282, 0.0
    %v316 = vmax.f32 %v284, 0.0
    %v317 = vmax.f32 %v287, 0.0
    %v318 = vmax.f32 %v289, 0.0
    %v319 = vmax.f32 %v292, 0.0
    %v320 = vmax.f32 %v294, 0.0
    %v321 = vmax.f32 %v297, 0.0
    %v322 = vmax.f32 %v299, 0.0
    %v323 = vmax.f32 %v302, 0.0
    %v324 = vmax.f32 %v304, 0.0
    %v325 = vmax.f32 %v307, 0.0
    %v326 = vmax.f32 %v309, 0.0
    %327 = vxpose.xlu0.b32.start [1/16] %v311, 128
    %328 = vxpose.xlu0.b32.cont [2/16] %v312, 128
    %329 = vxpose.xlu0.b32.cont [3/16] %v313, 128
    %330 = vxpose.xlu0.b32.cont [4/16] %v314, 128
    %331 = vxpose.xlu0.b32.cont [5/16] %v315, 128
    %332 = vxpose.xlu0.b32.cont [6/16] %v316, 128
    %333 = vxpose.xlu0.b32.cont [7/16] %v317, 128
    %334 = vxpose.xlu0.b32.cont [8/16] %v318, 128
    %335 = vxpose.xlu0.b32.cont [9/16] %v319, 128
    %336 = vxpose.xlu0.b32.cont [10/16] %v320, 128
    %337 = vxpose.xlu0.b32.cont [11/16] %v321, 128
    %338 = vxpose.xlu0.b32.cont [12/16] %v322, 128
    %339 = vxpose.xlu0.b32.cont [13/16] %v323, 128
    %340 = vxpose.xlu0.b32.cont [14/16] %v324, 128
    %341 = vxpose.xlu0.b32.cont [15/16] %v325, 128
    %342 = vxpose.xlu0.b32.end [16/16] %v326, 128
    %v343 = vpop.trf.xlu0
    %v344 = vpop.trf.xlu0
    %v345 = vpop.trf.xlu0
    %v346 = vpop.trf.xlu0
    %v347 = vpop.trf.xlu0
    %v348 = vpop.trf.xlu0
    %v349 = vpop.trf.xlu0
    %v350 = vpop.trf.xlu0
    %v351 = vpop.trf.xlu0
    %v352 = vpop.trf.xlu0
    %v353 = vpop.trf.xlu0
    %v354 = vpop.trf.xlu0
    %v355 = vpop.trf.xlu0
    %v356 = vpop.trf.xlu0
    %v357 = vpop.trf.xlu0
    %v358 = vpop.trf.xlu0
    %v359 = vld [vmem:[%s5] sm:$0xf]
    %v360 = vpack.c.bf16 %v344, %v343
    %v361 = vpack.c.bf16 %v346, %v345
    %v362 = vpack.c.bf16 %v348, %v347
    %v363 = vpack.c.bf16 %v350, %v349
    %v364 = vpack.c.bf16 %v352, %v351
    %v365 = vpack.c.bf16 %v354, %v353
    %v366 = vpack.c.bf16 %v356, %v355
    %v367 = vpack.c.bf16 %v358, %v357
    %v368 = vld [vmem:[%s6] sm:$0xff]
    %370 = vset.pattern.permute.xlu0 0
    %371 = vperm.xlu0 %370, %v368
    %v372 = vpop.permute.xlu0 %371
    %374 = vmatpush.bf16.msra.mxu0 %v367
    %375 = vmatpush.bf16.msra.mxu0 %v366
    %376 = vmatpush.bf16.msra.mxu0 %v365
    %377 = vmatpush.bf16.msra.mxu0 %v364
    %378 = vmatpush.bf16.msra.mxu0 %v363
    %379 = vmatpush.bf16.msra.mxu0 %v362
    %380 = vmatpush.bf16.msra.mxu0 %v361
    %381 = vmatpush.bf16.msra.mxu0 %v360
    %382 = vmatmul.bf16.gmra.mxu0 %v359
    %v383 = vpop.f32.mrf.mxu0
    %v384 = vadd.f32 %v372, %v383
    %v385 = vpop.f32.mrf.mxu0
    %386 = vdwg.mxu0
    %v387 = vlaneseq
    %v388 = vshrl.u32 %v387, 7
    %v389 = vmax.f32 %v384, 0.0
    %v390 = vand.u32 2147483647, %v384
    %v391 = vsub.f32 0.0, %v390
    %v392 = vmul.f32 %v391, 1.442695
    %v393 = vpow.pop %v392
    %v394 = vadd.f32 %v393, 1.0
    %v395 = vlog2.pop %v394
    %v396 = vmul.f32 %v395, 0.6931472
    %v397 = vmul.f32 -0.5, %v393
    %v398 = vadd.f32 %v397, 1.0
    %v399 = vmul.f32 %v398, %v393
    %v400 = vand.u32 2147483647, %v393
    %vm401 = vcmp.lt.f32.partialorder %v400, 0.0004427343
    %v402 = vsel %vm401, %v399, %v396
    %v403 = vadd.f32 %v389, %v402
    %v404 = vadd.f32 %v403, 1e-06
    %v405 = vtanh.pop %v384
    %v406 = vmul.f32 %v405, 3.1415927
    %vm407 = vcmp.eq.s32.totalorder %v388, 0
    %vm408 = vcmp.eq.s32.totalorder %v388, 1
    %v409 = vsel %vm408, %v406, %v384
    %v410 = vsel %vm407, %v404, %v409
    %411 = vst [vmem:[#allocation2] sm:$0xff] %v410
    // Predicated region
    $region30: #{tpu_custom_call.1} parent=1 // pred_check
      _
    $region31: #{tpu_custom_call.1} parent=1 // pred_check_branch
      %413 = sbr.rel (0) target = $region33
    $region32: #{tpu_custom_call.1} parent=1 // pred_region
      %415 = vsyncadd [#allocation3], 0
      %s417 = sshll.u32 [#allocation2], 4
      %s418 = int_to_ptr.vmem [resolvable:$true] %s417
      %s419 = sshll.u32 %s7, 4
      %s420 = int_to_ptr.hbm [resolvable:$true] %s419
      %422 = dma.vmem_to_hbm [thread:$0]  %s418, 128, %s420, [#allocation3]
    $region33: #{tpu_custom_call.1} parent=1 // pred_fallthru
      _
    // Predicated region
    $region34: #{tpu_custom_call.1} parent=1 // pred_check
      _
    $region35: #{tpu_custom_call.1} parent=1 // pred_check_branch
      %424 = sbr.rel (0) target = $region37
    $region36: #{tpu_custom_call.1} parent=1 // pred_region
      %426 = dma.done [#allocation3], 128
    $region37: #{tpu_custom_call.1} parent=1 // pred_fallthru
      _
    %427 = vsyncpa [#allocation3], 1

</llo_original>
